<compile_context>
chip_gen: v7x
topology: tpu7x:2x2x1
jax: 0.10.0
libtpu: 0.0.40
codegen_flags: <defaults>
</compile_context>

<pallas_src>
import functools

import jax
import jax.numpy as jnp
from jax.experimental import pallas as pl
from jax.experimental.pallas import tpu as pltpu

BN_EPS = 1e-5
NEG_BIG = -1e30  # softmax mask value for padded mixture columns (f32 only)


def _round_up(v, m):
    return ((v + m - 1) // m) * m


# --------------------------------------------------------------------------------------
# Fused kernel: fc1(+BN1 folded) -> PReLU -> fc2(+BN2/bias/mask folded) -> softmax
# --------------------------------------------------------------------------------------
def _estimation_kernel(alpha_ref, x_ref, w1_ref, b1_ref, w2_ref, o_ref):
    # fc1 with BN1 scale pre-folded into w1; bias row carries fc1 bias + BN1 shift
    # and a constant 1.0 in the spare hidden column used to inject layer-2 shifts.
    h = jnp.dot(x_ref[...], w1_ref[...], preferred_element_type=jnp.float32)
    h = h + b1_ref[...]

    # shared PReLU slope (SMEM scalar)
    a = alpha_ref[0]
    h = jnp.where(h >= 0.0, h, a * h)

    # fc2 with BN2 scale, fc2 bias + BN2 shift, and padded-lane mask all folded in.
    z = jnp.dot(h, w2_ref[...], preferred_element_type=jnp.float32)

    # numerically-stable softmax over the mixture (lane) axis; padded lanes hold
    # ~-1e30 so they underflow to exactly 0.
    z = z - jnp.max(z, axis=-1, keepdims=True)
    e = jnp.exp(z)
    inv = pl.reciprocal(jnp.sum(e, axis=-1, keepdims=True), approx=False)
    o_ref[...] = (e * inv).astype(o_ref.dtype)


# --------------------------------------------------------------------------------------
# One-time parameter preparation (BN fold, padding, shift injection) — hoisted out
# of the per-call path.
# --------------------------------------------------------------------------------------
def prepare_params(params):
    w1 = jnp.asarray(params["w1"], jnp.float32)   # (D, mid)
    w2 = jnp.asarray(params["w2"], jnp.float32)   # (mid, mix)
    D, mid = w1.shape
    mix = w2.shape[1]
    Hp = _round_up(mid + 1, 128)   # +1 spare hidden column used as a constant 1
    Np = _round_up(mix, 128)       # lane-dense output width

    scale1 = params["gamma1"] / jnp.sqrt(params["rv1"] + BN_EPS)
    shift1 = scale1 * (params["b1"] - params["rm1"]) + params["beta1"]
    scale2 = params["gamma2"] / jnp.sqrt(params["rv2"] + BN_EPS)
    shift2 = scale2 * (params["b2"] - params["rm2"]) + params["beta2"]

    # Layer 1: fold scale1 into the weight columns; bias row = shift1, plus a 1.0
    # in spare column `mid` (PReLU(1)=1) so layer-2 shifts ride through the matmul.
    w1p = jnp.zeros((D, Hp), jnp.float32).at[:, :mid].set(w1 * scale1[None, :])
    b1row = (jnp.zeros((1, Hp), jnp.float32)
             .at[0, :mid].set(shift1)
             .at[0, mid].set(1.0))

    # Layer 2: fold scale2 into the weights; row `mid` (multiplied by the constant-1
    # hidden column) carries shift2 for real mixtures and NEG_BIG for padded lanes.
    w2p = (jnp.zeros((Hp, Np), jnp.float32)
           .at[:mid, :mix].set(w2 * scale2[None, :])
           .at[mid, :mix].set(shift2)
           .at[mid, mix:].set(NEG_BIG))

    alpha = jnp.reshape(jnp.asarray(params["alpha"], jnp.float32), (1,))

    return {"w1p": w1p, "b1row": b1row, "w2p": w2p, "alpha": alpha,
            "D": D, "mid": mid, "mix": mix, "Hp": Hp, "Np": Np}


def _pick_batch_tiling(B, block_m):
    """Return (TM, Mp): one big tile for small B; even #tiles for large B (v7x)."""
    Bp = _round_up(B, 8)
    if Bp <= block_m:
        return Bp, Bp
    n_tiles = -(-Bp // block_m)
    if n_tiles % 2:           # even number of grid steps -> both v7x TCs busy
        n_tiles += 1
    tm = _round_up(-(-Bp // n_tiles), 8)
    return tm, tm * n_tiles


def estimation_net_forward(x, prep, *, block_m=1024):
    """x: (B, input_dim) -> softmax mixture weights (B, mixtures)."""
    x = jnp.asarray(x, jnp.float32)
    B, D = x.shape
    assert D == prep["D"]
    Hp, Np, mix = prep["Hp"], prep["Np"], prep["mix"]

    TM, Mp = _pick_batch_tiling(B, block_m)
    xp = x if Mp == B else jnp.pad(x, ((0, Mp - B), (0, 0)))

    out = pl.pallas_call(
        _estimation_kernel,
        out_shape=jax.ShapeDtypeStruct((Mp, Np), jnp.float32),
        grid_spec=pltpu.PrefetchScalarGridSpec(
            num_scalar_prefetch=0,
            grid=(Mp // TM,),
            in_specs=[
                pl.BlockSpec(memory_space=pltpu.MemorySpace.SMEM),  # PReLU alpha
                pl.BlockSpec((TM, D), lambda i: (i, 0)),            # x (lanes unpadded)
                pl.BlockSpec((D, Hp), lambda i: (0, 0)),            # w1 (resident)
                pl.BlockSpec((1, Hp), lambda i: (0, 0)),            # bias row (resident)
                pl.BlockSpec((Hp, Np), lambda i: (0, 0)),           # w2 (resident)
            ],
            out_specs=pl.BlockSpec((TM, Np), lambda i: (i, 0)),     # lane-dense store
        ),
        compiler_params=pltpu.CompilerParams(
            dimension_semantics=("parallel",)),
    )(prep["alpha"], xp, prep["w1p"], prep["b1row"], prep["w2p"])
    return out[:B, :mix]


# --------------------------------------------------------------------------------------
# Pure-JAX reference (for correctness) and deterministic parameter construction
# --------------------------------------------------------------------------------------
def estimation_net_reference(x, params):
    h = x @ params["w1"] + params["b1"]
    h = (h - params["rm1"]) / jnp.sqrt(params["rv1"] + BN_EPS) * params["gamma1"] + params["beta1"]
    h = jnp.where(h >= 0.0, h, params["alpha"][0] * h)
    z = h @ params["w2"] + params["b2"]
    z = (z - params["rm2"]) / jnp.sqrt(params["rv2"] + BN_EPS) * params["gamma2"] + params["beta2"]
    return jax.nn.softmax(z, axis=1)


def init_params(key, input_dim, mid_dim, mixtures):
    """Shapes/init follow the PyTorch __init__: kaiming_normal_ weights, zero biases,
    BN gamma=1/beta=0 (running mean=0, var=1), PReLU alpha=0.25."""
    k1, k2 = jax.random.split(key)
    w1 = jax.random.normal(k1, (input_dim, mid_dim), jnp.float32) * (2.0 / input_dim) ** 0.5
    w2 = jax.random.normal(k2, (mid_dim, mixtures), jnp.float32) * (2.0 / mid_dim) ** 0.5
    return {
        "w1": w1,
        "b1": jnp.zeros((mid_dim,), jnp.float32),
        "gamma1": jnp.ones((mid_dim,), jnp.float32),
        "beta1": jnp.zeros((mid_dim,), jnp.float32),
        "rm1": jnp.zeros((mid_dim,), jnp.float32),
        "rv1": jnp.ones((mid_dim,), jnp.float32),
        "w2": w2,
        "b2": jnp.zeros((mixtures,), jnp.float32),
        "gamma2": jnp.ones((mixtures,), jnp.float32),
        "beta2": jnp.zeros((mixtures,), jnp.float32),
        "rm2": jnp.zeros((mixtures,), jnp.float32),
        "rv2": jnp.ones((mixtures,), jnp.float32),
        "alpha": jnp.full((1,), 0.25, jnp.float32),
    }


if __name__ == "__main__":
    # Small shapes consistent with the module (latent5 / mixture3 DAGMM estimation net).
    batch, input_dim, mid_dim, mixtures = 8, 5, 10, 3

    key = jax.random.PRNGKey(0)
    kx, kp = jax.random.split(key)
    x = jax.random.normal(kx, (batch, input_dim), jnp.float32)
    params = init_params(kp, input_dim, mid_dim, mixtures)

    # One-time parameter folding/padding; per-call path only runs the pallas_call.
    prep = prepare_params(params)
    fwd = jax.jit(functools.partial(estimation_net_forward, prep=prep))
    out = jax.block_until_ready(fwd(x))

    assert out.shape == (batch, mixtures), out.shape
    assert jnp.all(jnp.isfinite(out))
    assert jnp.allclose(jnp.sum(out, axis=1), 1.0, atol=1e-5)  # rows are softmax

    ref = estimation_net_reference(x, params)
    assert jnp.allclose(out, ref, atol=1e-5, rtol=1e-5), float(jnp.max(jnp.abs(out - ref)))

    print("KERNEL_OK")
</pallas_src>

<mosaic_0001>
module attributes {stable_mosaic.version = 11 : i64} {
  func.func @_estimation_kernel(%arg0: i32, %arg1: memref<1xf32, #tpu.memory_space<smem>>, %arg2: memref<8x5xf32, #tpu.memory_space<vmem>>, %arg3: memref<5x128xf32, #tpu.memory_space<vmem>>, %arg4: memref<1x128xf32, #tpu.memory_space<vmem>>, %arg5: memref<128x128xf32, #tpu.memory_space<vmem>>, %arg6: memref<8x128xf32, #tpu.memory_space<vmem>>) attributes {dimension_semantics = [#tpu.dimension_semantics<parallel>], iteration_bounds = array<i64: 1>, scalar_prefetch = 0 : i64, scratch_operands = 0 : i64, tpu.core_type = #tpu.core_type<tc>, window_params = [{transform_indices = @transform_0, window_bounds = array<i64: 1>}, {transform_indices = @transform_1, window_bounds = array<i64: 8, 5>}, {pipeline_mode = #tpu.pipeline_mode<synchronous>, transform_indices = @transform_2, window_bounds = array<i64: 5, 128>}, {pipeline_mode = #tpu.pipeline_mode<synchronous>, transform_indices = @transform_3, window_bounds = array<i64: 1, 128>}, {pipeline_mode = #tpu.pipeline_mode<synchronous>, transform_indices = @transform_4, window_bounds = array<i64: 128, 128>}, {transform_indices = @transform_5, window_bounds = array<i64: 8, 128>}]} {
    %c0 = arith.constant 0 : index
    %c0_0 = arith.constant 0 : index
    %0 = vector.load %arg2[%c0, %c0_0] : memref<8x5xf32, #tpu.memory_space<vmem>>, vector<8x5xf32>
    %c0_1 = arith.constant 0 : index
    %c0_2 = arith.constant 0 : index
    %1 = vector.load %arg3[%c0_1, %c0_2] : memref<5x128xf32, #tpu.memory_space<vmem>>, vector<5x128xf32>
    %cst = arith.constant dense<0.000000e+00> : vector<8x128xf32>
    %2 = tpu.matmul %0, %1, %cst {dimension_numbers = #tpu.dot_dimension_numbers<[1], [0], [0], [1], [0, 0, 1, 1], [], []>} : vector<8x5xf32>, vector<5x128xf32>, vector<8x128xf32> -> vector<8x128xf32>
    %c0_3 = arith.constant 0 : index
    %c0_4 = arith.constant 0 : index
    %3 = vector.load %arg4[%c0_3, %c0_4] : memref<1x128xf32, #tpu.memory_space<vmem>>, vector<1x128xf32>
    %4 = vector.broadcast %3 : vector<1x128xf32> to vector<8x128xf32>
    %5 = arith.addf %2, %4 : vector<8x128xf32>
    %c0_5 = arith.constant 0 : index
    %6 = memref.load %arg1[%c0_5] : memref<1xf32, #tpu.memory_space<smem>>
    %cst_6 = arith.constant 0.000000e+00 : f32
    %7 = vector.broadcast %cst_6 : f32 to vector<8x128xf32>
    %8 = arith.cmpf oge, %5, %7 : vector<8x128xf32>
    %9 = vector.broadcast %6 : f32 to vector<8x128xf32>
    %10 = arith.mulf %9, %5 : vector<8x128xf32>
    %11 = arith.select %8, %5, %10 : vector<8x128xi1>, vector<8x128xf32>
    %c0_7 = arith.constant 0 : index
    %c0_8 = arith.constant 0 : index
    %12 = vector.load %arg5[%c0_7, %c0_8] : memref<128x128xf32, #tpu.memory_space<vmem>>, vector<128x128xf32>
    %cst_9 = arith.constant dense<0.000000e+00> : vector<8x128xf32>
    %13 = tpu.matmul %11, %12, %cst_9 {dimension_numbers = #tpu.dot_dimension_numbers<[1], [0], [0], [1], [0, 0, 1, 1], [], []>} : vector<8x128xf32>, vector<128x128xf32>, vector<8x128xf32> -> vector<8x128xf32>
    %cst_10 = arith.constant dense<0xFF800000> : vector<8xf32>
    %14 = vector.multi_reduction <maximumf>, %13, %cst_10 [1] : vector<8x128xf32> to vector<8xf32>
    %15 = vector.shape_cast %14 : vector<8xf32> to vector<8x1xf32>
    %16 = vector.broadcast %15 : vector<8x1xf32> to vector<8x128xf32>
    %17 = arith.subf %13, %16 : vector<8x128xf32>
    %18 = math.exp %17 : vector<8x128xf32>
    %cst_11 = arith.constant dense<0.000000e+00> : vector<8xf32>
    %19 = vector.multi_reduction <add>, %18, %cst_11 [1] : vector<8x128xf32> to vector<8xf32>
    %20 = vector.shape_cast %19 : vector<8xf32> to vector<8x1xf32>
    %21 = tpu.reciprocal %20 : vector<8x1xf32> -> vector<8x1xf32>
    %22 = vector.broadcast %21 : vector<8x1xf32> to vector<8x128xf32>
    %23 = arith.mulf %18, %22 : vector<8x128xf32>
    %c0_12 = arith.constant 0 : index
    %c0_13 = arith.constant 0 : index
    %24 = vector.load %arg6[%c0_12, %c0_13] : memref<8x128xf32, #tpu.memory_space<vmem>>, vector<8x128xf32>
    tpu.vector_store %arg6[%c0_12, %c0_13], %23 {strides = array<i32>} : memref<8x128xf32, #tpu.memory_space<vmem>>, vector<8x128xf32>,
    return
  }
  func.func @transform_0(%arg0: i32) -> i32 {
    %c0_i32 = arith.constant 0 : i32
    %c0_i32_0 = arith.constant 0 : i32
    return %c0_i32 : i32
  }
  func.func @transform_1(%arg0: i32) -> (i32, i32) {
    %c0_i32 = arith.constant 0 : i32
    %c0_i32_0 = arith.constant 0 : i32
    return %arg0, %c0_i32 : i32, i32
  }
  func.func @transform_2(%arg0: i32) -> (i32, i32) {
    %c0_i32 = arith.constant 0 : i32
    %c0_i32_0 = arith.constant 0 : i32
    %c0_i32_1 = arith.constant 0 : i32
    return %c0_i32, %c0_i32_0 : i32, i32
  }
  func.func @transform_3(%arg0: i32) -> (i32, i32) {
    %c0_i32 = arith.constant 0 : i32
    %c0_i32_0 = arith.constant 0 : i32
    %c0_i32_1 = arith.constant 0 : i32
    return %c0_i32, %c0_i32_0 : i32, i32
  }
  func.func @transform_4(%arg0: i32) -> (i32, i32) {
    %c0_i32 = arith.constant 0 : i32
    %c0_i32_0 = arith.constant 0 : i32
    %c0_i32_1 = arith.constant 0 : i32
    return %c0_i32, %c0_i32_0 : i32, i32
  }
  func.func @transform_5(%arg0: i32) -> (i32, i32) {
    %c0_i32 = arith.constant 0 : i32
    %c0_i32_0 = arith.constant 0 : i32
    return %arg0, %c0_i32 : i32, i32
  }
}

</mosaic_0001>

<llo_original>
// kernel: estimation_net_forward.1
$region0: #{estimation_net_forward.1}
  #allocation0 [shape = 'u32[]', space=smem, size = 0x4, offset = 0x4, fixed_abs, tag = 'smem constant byte address 0x4 - core index']
  #allocation1 [shape = 'u32[144,128]{1,0:T(1,128)}', space=vmem, size = 0x12000, scoped, tag = 'internal scratch']
  #allocation2 [shape = 'f32[1]{0:T(128)S(6)}', space=smem, size = 0x200, scoped, tag = 'scoped memory for estimation_net_forward.1']
  %s0 = inlined_call_operand.<no memory space> [shape: f32[1], index: 0, kind: input, shape index: {}]
  %s1 = inlined_call_operand.hbm [shape: f32[8,5], index: 1, kind: input, shape index: {}]
  %s2 = inlined_call_operand.hbm [shape: f32[5,128], index: 2, kind: input, shape index: {}]
  %s3 = inlined_call_operand.vmem [shape: f32[1,128], index: 3, kind: input, shape index: {}]
  %s4 = inlined_call_operand.hbm [shape: f32[128,128], index: 4, kind: input, shape index: {}]
  %s5 = inlined_call_operand.vmem [shape: f32[8,128], index: 5, kind: output, shape index: {}]
  %s6 = sld [smem:[#allocation0]]
  $region42: #{estimation_net_forward.1} parent=0
    _
  %s8 = ssub.s32 1, %s6
  %s9 = scalar_select 0, %s8, %s6
  %10 = sst [smem:[#allocation2]] %s0
  $region1: #{estimation_net_forward.1} parent=0
    #allocation3 [shape = 'u8[4096]{0}', space=vmem, size = 0x1000, scoped, tag = 'input window, operand 1, single buffered']
    #allocation4 [shape = 's32[1]{0}', space=sflag, size = 0x4, scoped, tag = 'scoped memory for estimation_net_forward.1']
    #allocation5 [shape = 'u8[4096]{0}', space=vmem, size = 0x1000, scoped, tag = 'input window, operand 2, single buffered']
    #allocation6 [shape = 's32[1]{0}', space=sflag, size = 0x4, scoped, tag = 'scoped memory for estimation_net_forward.1']
    #allocation7 [shape = 'u8[65536]{0}', space=vmem, size = 0x10000, scoped, tag = 'input window, operand 4, single buffered']
    %11 = vsyncpa [#allocation4], 0
    %12 = vsyncpa [#allocation6], 0
    // Predicated region
    $region2: #{estimation_net_forward.1} parent=1 // pred_check
      _
    $region3: #{estimation_net_forward.1} parent=1 // pred_check_branch
      %14 = sbr.rel (0) target = $region5
    $region4: #{estimation_net_forward.1} parent=1 // pred_region
      _
    $region5: #{estimation_net_forward.1} parent=1 // pred_fallthru
      _
    // Predicated region
    $region6: #{estimation_net_forward.1} parent=1 // pred_check
      _
    $region7: #{estimation_net_forward.1} parent=1 // pred_check_branch
      %16 = sbr.rel (0) target = $region9
    $region8: #{estimation_net_forward.1} parent=1 // pred_region
      %s18 = ssub.s32 128, 128
      %19 = vsyncadd [#allocation4], %s18
      %s21 = sshll.u32 [#allocation3], 4
      %s22 = int_to_ptr.vmem [resolvable:$true] %s21
      %24 = dma.hbm_to_vmem [thread:$0]  %s1, 128, %s22, [#allocation4]
    $region9: #{estimation_net_forward.1} parent=1 // pred_fallthru
      _
    // Predicated region
    $region10: #{estimation_net_forward.1} parent=1 // pred_check
      _
    $region11: #{estimation_net_forward.1} parent=1 // pred_check_branch
      %26 = sbr.rel (0) target = $region13
    $region12: #{estimation_net_forward.1} parent=1 // pred_region
      %s28 = ssub.s32 128, 128
      %29 = vsyncadd [#allocation6], %s28
      %s31 = sshll.u32 [#allocation5], 4
      %s32 = int_to_ptr.vmem [resolvable:$true] %s31
      %34 = dma.hbm_to_vmem [thread:$0]  %s2, 128, %s32, [#allocation6]
    $region13: #{estimation_net_forward.1} parent=1 // pred_fallthru
      _
    // Predicated region
    $region14: #{estimation_net_forward.1} parent=1 // pred_check
      _
    $region15: #{estimation_net_forward.1} parent=1 // pred_check_branch
      %36 = sbr.rel (0) target = $region17
    $region16: #{estimation_net_forward.1} parent=1 // pred_region
      _
    $region17: #{estimation_net_forward.1} parent=1 // pred_fallthru
      _
    // Predicated region
    $region18: #{estimation_net_forward.1} parent=1 // pred_check
      _
    $region19: #{estimation_net_forward.1} parent=1 // pred_check_branch
      %38 = sbr.rel (0) target = $region21
    $region20: #{estimation_net_forward.1} parent=1 // pred_region
      %s40 = ssub.s32 2048, 2048
      %41 = vsyncadd [#allocation6], %s40
      %s42 = sshll.u32 [#allocation7], 4
      %s43 = int_to_ptr.vmem [resolvable:$true] %s42
      %48 = dma.hbm_to_vmem [thread:$0]  %s4, 2048, %s43, [#allocation6], 128, 128, 8
    $region21: #{estimation_net_forward.1} parent=1 // pred_fallthru
      _
    // Predicated region
    $region22: #{estimation_net_forward.1} parent=1 // pred_check
      _
    $region23: #{estimation_net_forward.1} parent=1 // pred_check_branch
      %50 = sbr.rel (0) target = $region25
    $region24: #{estimation_net_forward.1} parent=1 // pred_region
      %51 = dma.done [#allocation4], 128
    $region25: #{estimation_net_forward.1} parent=1 // pred_fallthru
      _
    // Predicated region
    $region26: #{estimation_net_forward.1} parent=1 // pred_check
      _
    $region27: #{estimation_net_forward.1} parent=1 // pred_check_branch
      %53 = sbr.rel (0) target = $region29
    $region28: #{estimation_net_forward.1} parent=1 // pred_region
      %54 = dma.done [#allocation6], 128
    $region29: #{estimation_net_forward.1} parent=1 // pred_fallthru
      _
    // Predicated region
    $region30: #{estimation_net_forward.1} parent=1 // pred_check
      _
    $region31: #{estimation_net_forward.1} parent=1 // pred_check_branch
      %56 = sbr.rel (0) target = $region33
    $region32: #{estimation_net_forward.1} parent=1 // pred_region
      %57 = dma.done [#allocation6], 2048
    $region33: #{estimation_net_forward.1} parent=1 // pred_fallthru
      _
    %v58 = vld [vmem:[#allocation3] sm:$0xff]
    %v59 = vld [vmem:[#allocation5] sm:$0x1f]
    %v60 = vld [vmem:[%s3] sm:$0x1]
    %v62 = vlaneseq
    %v63 = vshrl.u32 %v62, 7
    %v64 = vsub.s32 0, %v63
    %v65 = vrot.slane %v60, %v64
    %vm67 = vcmask 39936
    %v69 = vsel %vm67, %v58, 0
    %vm71 = vcmask 1044480
    %v73 = vsel %vm71, %v59, 0
    %75 = vmatprep.subr.mxu0 0.0
    %76 = vmatpush1.msra.mxu0 %v73
    %77 = vmatprep.subr.mxu0 0.0
    %78 = vmatpush1.msra.mxu0 0.0
    %79 = vmatprep.subr.mxu0 0.0
    %80 = vmatpush1.msra.mxu0 0.0
    %81 = vmatprep.subr.mxu0 0.0
    %82 = vmatpush1.msra.mxu0 0.0
    %83 = vmatprep.subr.mxu0 0.0
    %84 = vmatpush1.msra.mxu0 0.0
    %85 = vmatprep.subr.mxu0 0.0
    %86 = vmatpush1.msra.mxu0 0.0
    %87 = vmatprep.subr.mxu0 0.0
    %88 = vmatpush1.msra.mxu0 0.0
    %89 = vmatprep.subr.mxu0 0.0
    %90 = vmatpush1.msra.mxu0 0.0
    %91 = vmatprep.subr.mxu0 0.0
    %92 = vmatpush1.msra.mxu0 0.0
    %93 = vmatprep.subr.mxu0 0.0
    %94 = vmatpush1.msra.mxu0 0.0
    %95 = vmatprep.subr.mxu0 0.0
    %96 = vmatpush1.msra.mxu0 0.0
    %97 = vmatprep.subr.mxu0 0.0
    %98 = vmatpush1.msra.mxu0 0.0
    %99 = vmatprep.subr.mxu0 0.0
    %100 = vmatpush1.msra.mxu0 0.0
    %101 = vmatprep.subr.mxu0 0.0
    %102 = vmatpush1.msra.mxu0 0.0
    %103 = vmatprep.subr.mxu0 0.0
    %104 = vmatpush1.msra.mxu0 0.0
    %105 = vmatprep.subr.mxu0 0.0
    %106 = vmatpush1.msra.mxu0 0.0
    %107 = vmatprep.subr.mxu0 0.0
    %108 = vmatpush1.msra.mxu0 0.0
    %109 = vmatprep.subr.mxu0 0.0
    %110 = vmatpush1.msra.mxu0 0.0
    %111 = vmatprep.subr.mxu0 0.0
    %112 = vmatpush1.msra.mxu0 0.0
    %113 = vmatprep.subr.mxu0 0.0
    %114 = vmatpush1.msra.mxu0 0.0
    %115 = vmatprep.subr.mxu0 0.0
    %116 = vmatpush1.msra.mxu0 0.0
    %117 = vmatprep.subr.mxu0 0.0
    %118 = vmatpush1.msra.mxu0 0.0
    %119 = vmatprep.subr.mxu0 0.0
    %120 = vmatpush1.msra.mxu0 0.0
    %121 = vmatprep.subr.mxu0 0.0
    %122 = vmatpush1.msra.mxu0 0.0
    %123 = vmatprep.subr.mxu0 0.0
    %124 = vmatpush1.msra.mxu0 0.0
    %125 = vmatprep.subr.mxu0 0.0
    %126 = vmatpush1.msra.mxu0 0.0
    %127 = vmatprep.subr.mxu0 0.0
    %128 = vmatpush1.msra.mxu0 0.0
    %129 = vmatprep.subr.mxu0 0.0
    %130 = vmatpush1.msra.mxu0 0.0
    %131 = vmatprep.subr.mxu0 0.0
    %132 = vmatpush1.msra.mxu0 0.0
    %133 = vmatprep.subr.mxu0 0.0
    %134 = vmatpush1.msra.mxu0 0.0
    %135 = vmatprep.subr.mxu0 0.0
    %136 = vmatpush1.msra.mxu0 0.0
    %137 = vmatprep.subr.mxu0 0.0
    %138 = vmatpush1.msra.mxu0 0.0
    %139 = vmatprep.mubr.f32.mxu0 0.0
    %140 = vmatmul.mubr.f32.gmra.mrb[0].mxu0 %v69
    %v141 = vpop.f32.mrb[0].mxu0
    %v142 = vadd.f32 %v65, %v141
    %v143 = vpop.f32.mrb[0].mxu0
    %144 = vdwg.mxu0
    %s145 = sld [smem:[#allocation2]]
    %vm146 = vcmp.ge.f32.partialorder %v142, 0.0
    %v147 = vstv %s145
    %v148 = vmul.f32 %v147, %v142
    %v149 = vsel %vm146, %v142, %v148
    %v150 = vld [vmem:[#allocation7] sm:$0xff]
    %v151 = vld [vmem:[#allocation7 + $0x8] sm:$0xff]
    %v152 = vld [vmem:[#allocation7 + $0x10] sm:$0xff]
    %v153 = vld [vmem:[#allocation7 + $0x18] sm:$0xff]
    %v154 = vld [vmem:[#allocation7 + $0x20] sm:$0xff]
    %v155 = vld [vmem:[#allocation7 + $0x28] sm:$0xff]
    %v156 = vld [vmem:[#allocation7 + $0x30] sm:$0xff]
    %v157 = vld [vmem:[#allocation7 + $0x38] sm:$0xff]
    %v158 = vld [vmem:[#allocation7 + $0x40] sm:$0xff]
    %v159 = vld [vmem:[#allocation7 + $0x48] sm:$0xff]
    %v160 = vld [vmem:[#allocation7 + $0x50] sm:$0xff]
    %v161 = vld [vmem:[#allocation7 + $0x58] sm:$0xff]
    %v162 = vld [vmem:[#allocation7 + $0x60] sm:$0xff]
    %v163 = vld [vmem:[#allocation7 + $0x68] sm:$0xff]
    %v164 = vld [vmem:[#allocation7 + $0x70] sm:$0xff]
    %v165 = vld [vmem:[#allocation7 + $0x78] sm:$0xff]
    %166 = vmatprep.subr.mxu0 0.0
    %167 = vmatpush1.msra.mxu0 %v150
    %168 = vmatprep.subr.mxu0 0.0
    %169 = vmatpush1.msra.mxu0 %v151
    %170 = vmatprep.subr.mxu0 0.0
    %171 = vmatpush1.msra.mxu0 %v152
    %172 = vmatprep.subr.mxu0 0.0
    %173 = vmatpush1.msra.mxu0 %v153
    %174 = vmatprep.subr.mxu0 0.0
    %175 = vmatpush1.msra.mxu0 %v154
    %176 = vmatprep.subr.mxu0 0.0
    %177 = vmatpush1.msra.mxu0 %v155
    %178 = vmatprep.subr.mxu0 0.0
    %179 = vmatpush1.msra.mxu0 %v156
    %180 = vmatprep.subr.mxu0 0.0
    %181 = vmatpush1.msra.mxu0 %v157
    %182 = vmatprep.subr.mxu0 0.0
    %183 = vmatpush1.msra.mxu0 %v158
    %184 = vmatprep.subr.mxu0 0.0
    %185 = vmatpush1.msra.mxu0 %v159
    %186 = vmatprep.subr.mxu0 0.0
    %187 = vmatpush1.msra.mxu0 %v160
    %188 = vmatprep.subr.mxu0 0.0
    %189 = vmatpush1.msra.mxu0 %v161
    %190 = vmatprep.subr.mxu0 0.0
    %191 = vmatpush1.msra.mxu0 %v162
    %192 = vmatprep.subr.mxu0 0.0
    %193 = vmatpush1.msra.mxu0 %v163
    %194 = vmatprep.subr.mxu0 0.0
    %195 = vmatpush1.msra.mxu0 %v164
    %196 = vmatprep.subr.mxu0 0.0
    %197 = vmatpush1.msra.mxu0 %v165
    %198 = vmatprep.subr.mxu0 0.0
    %199 = vmatpush1.msra.mxu0 0.0
    %200 = vmatprep.subr.mxu0 0.0
    %201 = vmatpush1.msra.mxu0 0.0
    %202 = vmatprep.subr.mxu0 0.0
    %203 = vmatpush1.msra.mxu0 0.0
    %204 = vmatprep.subr.mxu0 0.0
    %205 = vmatpush1.msra.mxu0 0.0
    %206 = vmatprep.subr.mxu0 0.0
    %207 = vmatpush1.msra.mxu0 0.0
    %208 = vmatprep.subr.mxu0 0.0
    %209 = vmatpush1.msra.mxu0 0.0
    %210 = vmatprep.subr.mxu0 0.0
    %211 = vmatpush1.msra.mxu0 0.0
    %212 = vmatprep.subr.mxu0 0.0
    %213 = vmatpush1.msra.mxu0 0.0
    %214 = vmatprep.subr.mxu0 0.0
    %215 = vmatpush1.msra.mxu0 0.0
    %216 = vmatprep.subr.mxu0 0.0
    %217 = vmatpush1.msra.mxu0 0.0
    %218 = vmatprep.subr.mxu0 0.0
    %219 = vmatpush1.msra.mxu0 0.0
    %220 = vmatprep.subr.mxu0 0.0
    %221 = vmatpush1.msra.mxu0 0.0
    %222 = vmatprep.subr.mxu0 0.0
    %223 = vmatpush1.msra.mxu0 0.0
    %224 = vmatprep.subr.mxu0 0.0
    %225 = vmatpush1.msra.mxu0 0.0
    %226 = vmatprep.subr.mxu0 0.0
    %227 = vmatpush1.msra.mxu0 0.0
    %228 = vmatprep.subr.mxu0 0.0
    %229 = vmatpush1.msra.mxu0 0.0
    %230 = vmatprep.mubr.f32.mxu0 0.0
    %231 = vmatmul.mubr.f32.gmra.mrb[0].mxu0 %v149
    %v232 = vpop.f32.mrb[0].mxu0
    %v233 = vadd.f32 0.0, %v232
    %v234 = vpop.f32.mrb[0].mxu0
    %235 = vdwg.mxu0
    %236 = vmax.xlane.f32.xlu0 %v233
    %v237 = vpop.xlane.xlu0 %236
    %v238 = vsub.f32 %v233, %v237
    %v239 = vmul.f32 %v238, 1.442695
    %v240 = vpow.pop %v239
    %241 = vadd.xlane.f32.xlu0 %v240
    %v242 = vpop.xlane.xlu0 %241
    %v243 = vrcp.pop %v242
    %v244 = vmul.f32 %v240, %v243
    %245 = vst [vmem:[%s5] sm:$0xff] %v244
    // Predicated region
    $region34: #{estimation_net_forward.1} parent=1 // pred_check
      _
    $region35: #{estimation_net_forward.1} parent=1 // pred_check_branch
      %247 = sbr.rel (0) target = $region37
    $region36: #{estimation_net_forward.1} parent=1 // pred_region
      _
    $region37: #{estimation_net_forward.1} parent=1 // pred_fallthru
      _
    // Predicated region
    $region38: #{estimation_net_forward.1} parent=1 // pred_check
      _
    $region39: #{estimation_net_forward.1} parent=1 // pred_check_branch
      %249 = sbr.rel (0) target = $region41
    $region40: #{estimation_net_forward.1} parent=1 // pred_region
      _
    $region41: #{estimation_net_forward.1} parent=1 // pred_fallthru
      _
    %250 = vsyncpa [#allocation4], 1
    %251 = vsyncpa [#allocation6], 1

</llo_original>
